<compile_context>
chip_gen: v5e
topology: v5e:2x2
jax: 0.10.0
libtpu: 0.0.40
codegen_flags: <defaults>
</compile_context>

<pallas_src>
import functools
import math
import random

import numpy as np
import jax
import jax.numpy as jnp
from jax.experimental import pallas as pl
from jax.experimental.pallas import tpu as pltpu


# ------------------------------------------------------------------------------------
# Init-time precompute (host-side numpy "glue"): dense re-implementations of the
# scipy-sparse helpers from the reference module (builds the registered buffer `mat`).
# ------------------------------------------------------------------------------------
def calc_A_hat(adj):
    n = adj.shape[0]
    A = adj + np.eye(n)
    D = A.sum(axis=1)
    Dinv = 1.0 / np.sqrt(D)
    return (Dinv[:, None] * A) * Dinv[None, :]


def calc_avg_ppr_exact(adjs, prop_weights, alpha):
    avg = 0.0
    for i, adj in enumerate(adjs):
        n = adj.shape[0]
        A_hat = calc_A_hat(adj)
        A_inner = np.eye(n) - (1.0 - alpha) * A_hat
        avg = avg + prop_weights[i] * alpha * np.linalg.inv(A_inner)
    return avg


def mask_adj_matrix(adj, rng):
    n = adj.shape[0]
    masked_n_edges = 100
    k = int(math.sqrt(masked_n_edges / 2))
    influenced = rng.sample(range(1, n), k)
    m = adj.copy()
    for i in range(len(influenced)):
        for j in range(i + 1, len(influenced)):
            m[influenced[i], influenced[j]] = 0.0
            m[influenced[j], influenced[i]] = 0.0
    return m


def track_mixed_ppr(adjs, masked_adjs, prop_weights, ppr_mat, alpha):
    n = adjs[0].shape[0]
    M_total = np.zeros((n, n))  # reference uses np.empty; zeros for determinism
    for i, adj in enumerate(adjs):
        A = masked_adjs[i] + np.eye(n)
        D = A.sum(axis=1)
        Dinv = 1.0 / np.sqrt(D)
        M = A * Dinv[None, :]
        if i == 0:
            M_total += prop_weights[i] * (M @ M)
        else:
            M_total += prop_weights[i] * M
    M_prime_total = np.zeros((n, n))
    for i, adj in enumerate(adjs):
        A_p = adj + np.eye(n)
        D_p = A_p.sum(axis=1)
        Dinv_p = 1.0 / np.sqrt(D_p)
        M_p = A_p * Dinv_p[None, :]
        if i == 0:
            M_prime_total += prop_weights[i] * (M_p @ M_p)
        else:
            M_prime_total += prop_weights[i] * M_p
    diff = M_prime_total - M_total
    pushout = (alpha * diff) @ ppr_mat.T
    acc = pushout
    temp = alpha * M_prime_total
    acc = acc + temp @ pushout
    for _ in range(1):  # num_itr = 1
        new_temp = (temp * alpha) @ M_prime_total
        acc = acc + new_temp @ pushout
        temp = new_temp
    return ppr_mat + acc


# ------------------------------------------------------------------------------------
# Helpers / sizing policy
# ------------------------------------------------------------------------------------
_LANE = 128
_SUBLANE = 8
_SMALL_MAT_BYTES = 6 * 1024 * 1024  # mat (f32) at or below this stays VMEM-resident


def _round_up(x, m):
    return (x + m - 1) // m * m


def _cdiv(a, b):
    return (a + b - 1) // b


def _choose_tb(N, B, small_path):
    tb_cap = 64 if N >= 16384 else 128  # v7x (64 MiB VMEM): keep gather scratch modest
    tb = min(tb_cap, _round_up(max(B, 1), _SUBLANE))
    # v7x megacore wants >= 2 output tiles; the HBM path additionally wants >= 2 tiles
    # per core so cross-step gather double buffering has something to prefetch.
    target_tiles = 2 if small_path else 4
    while tb > _SUBLANE and _cdiv(B, tb) < target_tiles:
        tb = _round_up(tb // 2, _SUBLANE)
    return tb


def _vmem_limit(footprint_bytes):
    # Explicit limit derived from the real footprint (also lifts v5e's 16 MiB scoped
    # default); clamp to a sane range.
    return int(min(max(32 << 20, footprint_bytes * 5 // 4 + (2 << 20)), 128 << 20))


# ------------------------------------------------------------------------------------
# Kernel A: small-N fast path (mat fully VMEM-resident, no per-row HBM DMAs)
# ------------------------------------------------------------------------------------
def _vmem_gather_kernel(idx_ref, mat_ref, pred_ref, out_ref, gbuf, *, tb):
    base = pl.program_id(0) * tb
    for t in range(tb):
        row = idx_ref[base + t]
        gbuf[pl.ds(t, 1), :] = mat_ref[pl.ds(row, 1), :]
    out_ref[...] = jnp.dot(
        gbuf[...], pred_ref[...], preferred_element_type=jnp.float32
    )


def _build_small_forward(N, F, B):
    F_pad = _round_up(max(F, 1), _LANE)          # lane-dense output stores
    TB = _choose_tb(N, B, True)
    B_pad = _round_up(B, TB)
    n_tiles = B_pad // TB

    grid_spec = pltpu.PrefetchScalarGridSpec(
        num_scalar_prefetch=1,
        grid=(n_tiles,),
        in_specs=[
            pl.BlockSpec((N, N), lambda i, idx: (0, 0)),       # mat, VMEM-resident
            pl.BlockSpec((N, F_pad), lambda i, idx: (0, 0)),   # predictions (padded)
        ],
        out_specs=pl.BlockSpec((TB, F_pad), lambda i, idx: (i, 0)),
        scratch_shapes=[pltpu.VMEM((TB, N), jnp.float32)],
    )
    # Constant-index blocks still get 2 pipeline buffers -> budget explicitly.
    footprint = 2 * N * N * 4 + 2 * N * F_pad * 4 + 2 * TB * F_pad * 4 + TB * N * 4
    call = pl.pallas_call(
        functools.partial(_vmem_gather_kernel, tb=TB),
        out_shape=jax.ShapeDtypeStruct((B_pad, F_pad), jnp.float32),
        grid_spec=grid_spec,
        compiler_params=pltpu.CompilerParams(
            dimension_semantics=("parallel",),
            vmem_limit_bytes=_vmem_limit(footprint),
        ),
    )

    def forward(mat, predictions, idx):
        mat32 = mat.astype(jnp.float32)
        pred = predictions.astype(jnp.float32)
        if F_pad != F:
            pred = jnp.pad(pred, ((0, 0), (0, F_pad - F)))
        idx_p = jnp.zeros((B_pad,), jnp.int32).at[:B].set(idx.astype(jnp.int32))
        out = call(idx_p, mat32, pred)
        return out[:B, :F]

    return jax.jit(forward)


# ------------------------------------------------------------------------------------
# Kernel B: large-N path (bf16-packed HBM row gather, cross-step double buffering)
# ------------------------------------------------------------------------------------
def _hbm_gather_kernel(idx_ref, mat_hbm, pred_ref, out_ref, gbuf, sems, *, tb, half):
    o = pl.program_id(0)
    i = pl.program_id(1)
    n_inner = pl.num_programs(1)
    tile = o * n_inner + i
    slot = i % 2

    def issue(tile_idx, slot_idx):
        base = tile_idx * tb
        for t in range(tb):
            row = idx_ref[base + t]
            pltpu.make_async_copy(
                mat_hbm.at[pl.ds(row, 1), :],
                gbuf.at[slot_idx, pl.ds(t, 1), :],
                sems.at[slot_idx],
            ).start()

    # Per-core prologue: fires at inner == 0 of every outer step, so it is correct
    # whether or not the "parallel" outer axis is sharded across TensorCores (v7x).
    @pl.when(i == 0)
    def _():
        issue(tile, 0)

    # Prefetch the next tile's rows into the other slot; overlaps with this tile's
    # wait + matmul (indices are already resident in SMEM via scalar prefetch).
    @pl.when(i + 1 < n_inner)
    def _():
        issue(tile + 1, 1 - slot)

    # One aggregate wait: all row copies of a slot signal the same byte-counting DMA
    # semaphore; a single descriptor covering the whole (tb, half) slab consumes
    # exactly the sum of the tb row transfers (row sizes are identical).
    pltpu.make_async_copy(
        mat_hbm.at[pl.ds(0, tb), :], gbuf.at[slot], sems.at[slot]
    ).wait()

    # Unpack u32 -> 2 x bf16 halves (column order preserved: low 16 bits = cols
    # [0:half), high 16 bits = cols [half:)) and run two bf16 MXU matmuls, f32 acc.
    w = gbuf[slot]                                          # (tb, half) uint32
    lo = pltpu.bitcast(w << 16, jnp.float32).astype(jnp.bfloat16)
    hi = pltpu.bitcast(w & jnp.uint32(0xFFFF0000), jnp.float32).astype(jnp.bfloat16)
    out_ref[...] = (
        jnp.dot(lo, pred_ref[:half, :], preferred_element_type=jnp.float32)
        + jnp.dot(hi, pred_ref[half:, :], preferred_element_type=jnp.float32)
    )


def _build_hbm_forward(N, F, B):
    F_pad = _round_up(max(F, 1), _LANE)
    N_pad = _round_up(N, 32)          # even lane split; bf16 sublane-aligned halves
    half = N_pad // 2
    TB = _choose_tb(N, B, False)
    assert N >= TB, "HBM gather path expects N >= tile rows"
    n_outer = 2 if _cdiv(B, TB) >= 2 else 1   # >= 2 parallel steps for v7x megacore
    B_pad = _round_up(B, TB * n_outer)
    n_inner = B_pad // (TB * n_outer)

    grid_spec = pltpu.PrefetchScalarGridSpec(
        num_scalar_prefetch=1,
        grid=(n_outer, n_inner),
        in_specs=[
            pl.BlockSpec(memory_space=pl.ANY),                       # packed mat, HBM
            pl.BlockSpec((N_pad, F_pad), lambda o, i, idx: (0, 0)),  # predictions
        ],
        out_specs=pl.BlockSpec(
            (TB, F_pad), lambda o, i, idx: (o * n_inner + i, 0)
        ),
        scratch_shapes=[
            pltpu.VMEM((2, TB, half), jnp.uint32),  # double-buffered bf16-packed gather
            pltpu.SemaphoreType.DMA((2,)),          # one semaphore per gather slot
        ],
    )
    footprint = (
        2 * N_pad * F_pad * 2     # predictions (bf16) x 2 pipeline buffers
        + 2 * TB * F_pad * 4      # output (f32) x 2 pipeline buffers
        + 2 * TB * half * 4       # gather slots (packed bf16 == half the f32 bytes)
    )
    call = pl.pallas_call(
        functools.partial(_hbm_gather_kernel, tb=TB, half=half),
        out_shape=jax.ShapeDtypeStruct((B_pad, F_pad), jnp.float32),
        grid_spec=grid_spec,
        compiler_params=pltpu.CompilerParams(
            dimension_semantics=("parallel", "arbitrary"),
            vmem_limit_bytes=_vmem_limit(footprint),
        ),
    )

    def forward(mat, predictions, idx):
        # Pack bf16 mat two-columns-per-u32 so row-gather DMAs stay word-granular
        # while moving half the bytes of an f32 gather.
        mat_bf = mat.astype(jnp.bfloat16)
        if N_pad != N:
            mat_bf = jnp.pad(mat_bf, ((0, 0), (0, N_pad - N)))
        lo = jax.lax.bitcast_convert_type(mat_bf[:, :half], jnp.uint16).astype(jnp.uint32)
        hi = jax.lax.bitcast_convert_type(mat_bf[:, half:], jnp.uint16).astype(jnp.uint32)
        mat_packed = lo | (hi << 16)                     # (N, half) uint32

        pred = predictions.astype(jnp.bfloat16)
        pred = jnp.pad(pred, ((0, N_pad - N), (0, F_pad - F)))
        idx_p = jnp.zeros((B_pad,), jnp.int32).at[:B].set(idx.astype(jnp.int32))
        out = call(idx_p, mat_packed, pred)
        return out[:B, :F]

    return jax.jit(forward)


# ------------------------------------------------------------------------------------
# Dispatch + cache (no per-call rebuild / recompile, no hard sync in the hot path)
# ------------------------------------------------------------------------------------
@functools.lru_cache(maxsize=None)
def _get_forward(N, F, B, small_path):
    if small_path:
        return _build_small_forward(N, F, B)
    return _build_hbm_forward(N, F, B)


def mixed_dynamic_propagation(mat, predictions, idx, *, small_mat_bytes=_SMALL_MAT_BYTES):
    """out[b, :] = mat[idx[b], :] @ predictions   (dropout identity: drop_prob=None)."""
    N, N2 = mat.shape
    assert N == N2
    Np, F = predictions.shape
    assert Np == N
    B = int(idx.shape[0])
    small_path = (N * N * 4) <= small_mat_bytes
    fwd = _get_forward(int(N), int(F), B, bool(small_path))
    return fwd(mat, predictions, idx)


# ------------------------------------------------------------------------------------
if __name__ == "__main__":
    # ---- Case 1: the module as specified (small N -> VMEM fast path, f32) ----------
    N, F, B = 64, 16, 8
    n_graphs, alpha, prop_weights = 2, 0.1, [0.5, 0.5]

    np_rng = np.random.RandomState(0)
    py_rng = random.Random(0)
    adjs = []
    for _ in range(n_graphs):
        a = (np_rng.rand(N, N) < 0.1).astype(np.float64)
        a = np.triu(a, 1)
        a = a + a.T
        adjs.append(a)

    masked_adjs = [mask_adj_matrix(a, py_rng) for a in adjs]
    avg_ppr = calc_avg_ppr_exact(adjs, prop_weights, alpha)
    t_ppr = track_mixed_ppr(adjs, masked_adjs, prop_weights, avg_ppr, alpha)
    mat = jnp.asarray(t_ppr, dtype=jnp.float32)

    key = jax.random.PRNGKey(0)
    kp, ki, km, ki2 = jax.random.split(key, 4)
    predictions = jax.random.normal(kp, (N, F), dtype=jnp.float32)
    idx = jax.random.randint(ki, (B,), 0, N, dtype=jnp.int32)

    out = jax.block_until_ready(mixed_dynamic_propagation(mat, predictions, idx))
    ref = np.take(np.asarray(mat), np.asarray(idx), axis=0) @ np.asarray(predictions)
    assert out.shape == (B, F)
    np.testing.assert_allclose(np.asarray(out), ref, rtol=1e-3, atol=1e-3)

    # Batch-padding path (B not a multiple of 8).
    idx_small = idx[:5]
    out2 = jax.block_until_ready(mixed_dynamic_propagation(mat, predictions, idx_small))
    assert out2.shape == (5, F)
    np.testing.assert_allclose(np.asarray(out2), ref[:5], rtol=1e-3, atol=1e-3)

    # ---- Case 2: force the large-N HBM-gather path (bf16-packed rows, cross-step
    # double-buffered row DMAs, megacore-friendly 2-D grid) on a modest synthetic size.
    N2_, F2_, B2_ = 512, 16, 100
    mat2 = jax.random.normal(km, (N2_, N2_), dtype=jnp.float32) * 0.1
    pred2 = jax.random.normal(kp, (N2_, F2_), dtype=jnp.float32)
    idx2 = jax.random.randint(ki2, (B2_,), 0, N2_, dtype=jnp.int32)
    out3 = jax.block_until_ready(
        mixed_dynamic_propagation(mat2, pred2, idx2, small_mat_bytes=0)
    )
    ref3 = np.take(np.asarray(mat2), np.asarray(idx2), axis=0) @ np.asarray(pred2)
    assert out3.shape == (B2_, F2_)
    # bf16 gather path: looser tolerance vs the f32 reference (f32 accumulation).
    np.testing.assert_allclose(np.asarray(out3), ref3, rtol=3e-2, atol=3e-2)

    print("KERNEL_OK")
</pallas_src>

<mosaic_0001>
module attributes {stable_mosaic.version = 11 : i64} {
  func.func @_vmem_gather_kernel(%arg0: i32, %arg1: memref<8xi32, #tpu.memory_space<smem>>, %arg2: memref<64x64xf32, #tpu.memory_space<vmem>>, %arg3: memref<64x128xf32, #tpu.memory_space<vmem>>, %arg4: memref<8x128xf32, #tpu.memory_space<vmem>>, %arg5: memref<8x64xf32, #tpu.memory_space<vmem>>) attributes {dimension_semantics = [#tpu.dimension_semantics<parallel>], iteration_bounds = array<i64: 1>, scalar_prefetch = 1 : i64, scratch_operands = 1 : i64, tpu.core_type = #tpu.core_type<tc>, window_params = [{pipeline_mode = #tpu.pipeline_mode<synchronous>, transform_indices = @transform_0, window_bounds = array<i64: 64, 64>}, {pipeline_mode = #tpu.pipeline_mode<synchronous>, transform_indices = @transform_1, window_bounds = array<i64: 64, 128>}, {transform_indices = @transform_2, window_bounds = array<i64: 8, 128>}]} {
    %c8_i32 = arith.constant 8 : i32
    %0 = arith.muli %arg0, %c8_i32 : i32
    %c0_i32 = arith.constant 0 : i32
    %1 = arith.addi %0, %c0_i32 : i32
    %2 = arith.index_cast %1 : i32 to index
    %3 = memref.load %arg1[%2] : memref<8xi32, #tpu.memory_space<smem>>
    %4 = arith.index_cast %3 : i32 to index
    %c0 = arith.constant 0 : index
    %5 = vector.load %arg2[%4, %c0] : memref<64x64xf32, #tpu.memory_space<vmem>>, vector<1x64xf32>
    %c0_0 = arith.constant 0 : index
    %c0_1 = arith.constant 0 : index
    %6 = vector.load %arg5[%c0_0, %c0_1] : memref<8x64xf32, #tpu.memory_space<vmem>>, vector<1x64xf32>
    tpu.vector_store %arg5[%c0_0, %c0_1], %5 {strides = array<i32>} : memref<8x64xf32, #tpu.memory_space<vmem>>, vector<1x64xf32>,
    %c1_i32 = arith.constant 1 : i32
    %7 = arith.addi %0, %c1_i32 : i32
    %8 = arith.index_cast %7 : i32 to index
    %9 = memref.load %arg1[%8] : memref<8xi32, #tpu.memory_space<smem>>
    %10 = arith.index_cast %9 : i32 to index
    %c0_2 = arith.constant 0 : index
    %11 = vector.load %arg2[%10, %c0_2] : memref<64x64xf32, #tpu.memory_space<vmem>>, vector<1x64xf32>
    %c1 = arith.constant 1 : index
    %c0_3 = arith.constant 0 : index
    %12 = vector.load %arg5[%c1, %c0_3] : memref<8x64xf32, #tpu.memory_space<vmem>>, vector<1x64xf32>
    tpu.vector_store %arg5[%c1, %c0_3], %11 {strides = array<i32>} : memref<8x64xf32, #tpu.memory_space<vmem>>, vector<1x64xf32>,
    %c2_i32 = arith.constant 2 : i32
    %13 = arith.addi %0, %c2_i32 : i32
    %14 = arith.index_cast %13 : i32 to index
    %15 = memref.load %arg1[%14] : memref<8xi32, #tpu.memory_space<smem>>
    %16 = arith.index_cast %15 : i32 to index
    %c0_4 = arith.constant 0 : index
    %17 = vector.load %arg2[%16, %c0_4] : memref<64x64xf32, #tpu.memory_space<vmem>>, vector<1x64xf32>
    %c2 = arith.constant 2 : index
    %c0_5 = arith.constant 0 : index
    %18 = vector.load %arg5[%c2, %c0_5] : memref<8x64xf32, #tpu.memory_space<vmem>>, vector<1x64xf32>
    tpu.vector_store %arg5[%c2, %c0_5], %17 {strides = array<i32>} : memref<8x64xf32, #tpu.memory_space<vmem>>, vector<1x64xf32>,
    %c3_i32 = arith.constant 3 : i32
    %19 = arith.addi %0, %c3_i32 : i32
    %20 = arith.index_cast %19 : i32 to index
    %21 = memref.load %arg1[%20] : memref<8xi32, #tpu.memory_space<smem>>
    %22 = arith.index_cast %21 : i32 to index
    %c0_6 = arith.constant 0 : index
    %23 = vector.load %arg2[%22, %c0_6] : memref<64x64xf32, #tpu.memory_space<vmem>>, vector<1x64xf32>
    %c3 = arith.constant 3 : index
    %c0_7 = arith.constant 0 : index
    %24 = vector.load %arg5[%c3, %c0_7] : memref<8x64xf32, #tpu.memory_space<vmem>>, vector<1x64xf32>
    tpu.vector_store %arg5[%c3, %c0_7], %23 {strides = array<i32>} : memref<8x64xf32, #tpu.memory_space<vmem>>, vector<1x64xf32>,
    %c4_i32 = arith.constant 4 : i32
    %25 = arith.addi %0, %c4_i32 : i32
    %26 = arith.index_cast %25 : i32 to index
    %27 = memref.load %arg1[%26] : memref<8xi32, #tpu.memory_space<smem>>
    %28 = arith.index_cast %27 : i32 to index
    %c0_8 = arith.constant 0 : index
    %29 = vector.load %arg2[%28, %c0_8] : memref<64x64xf32, #tpu.memory_space<vmem>>, vector<1x64xf32>
    %c4 = arith.constant 4 : index
    %c0_9 = arith.constant 0 : index
    %30 = vector.load %arg5[%c4, %c0_9] : memref<8x64xf32, #tpu.memory_space<vmem>>, vector<1x64xf32>
    tpu.vector_store %arg5[%c4, %c0_9], %29 {strides = array<i32>} : memref<8x64xf32, #tpu.memory_space<vmem>>, vector<1x64xf32>,
    %c5_i32 = arith.constant 5 : i32
    %31 = arith.addi %0, %c5_i32 : i32
    %32 = arith.index_cast %31 : i32 to index
    %33 = memref.load %arg1[%32] : memref<8xi32, #tpu.memory_space<smem>>
    %34 = arith.index_cast %33 : i32 to index
    %c0_10 = arith.constant 0 : index
    %35 = vector.load %arg2[%34, %c0_10] : memref<64x64xf32, #tpu.memory_space<vmem>>, vector<1x64xf32>
    %c5 = arith.constant 5 : index
    %c0_11 = arith.constant 0 : index
    %36 = vector.load %arg5[%c5, %c0_11] : memref<8x64xf32, #tpu.memory_space<vmem>>, vector<1x64xf32>
    tpu.vector_store %arg5[%c5, %c0_11], %35 {strides = array<i32>} : memref<8x64xf32, #tpu.memory_space<vmem>>, vector<1x64xf32>,
    %c6_i32 = arith.constant 6 : i32
    %37 = arith.addi %0, %c6_i32 : i32
    %38 = arith.index_cast %37 : i32 to index
    %39 = memref.load %arg1[%38] : memref<8xi32, #tpu.memory_space<smem>>
    %40 = arith.index_cast %39 : i32 to index
    %c0_12 = arith.constant 0 : index
    %41 = vector.load %arg2[%40, %c0_12] : memref<64x64xf32, #tpu.memory_space<vmem>>, vector<1x64xf32>
    %c6 = arith.constant 6 : index
    %c0_13 = arith.constant 0 : index
    %42 = vector.load %arg5[%c6, %c0_13] : memref<8x64xf32, #tpu.memory_space<vmem>>, vector<1x64xf32>
    tpu.vector_store %arg5[%c6, %c0_13], %41 {strides = array<i32>} : memref<8x64xf32, #tpu.memory_space<vmem>>, vector<1x64xf32>,
    %c7_i32 = arith.constant 7 : i32
    %43 = arith.addi %0, %c7_i32 : i32
    %44 = arith.index_cast %43 : i32 to index
    %45 = memref.load %arg1[%44] : memref<8xi32, #tpu.memory_space<smem>>
    %46 = arith.index_cast %45 : i32 to index
    %c0_14 = arith.constant 0 : index
    %47 = vector.load %arg2[%46, %c0_14] : memref<64x64xf32, #tpu.memory_space<vmem>>, vector<1x64xf32>
    %c7 = arith.constant 7 : index
    %c0_15 = arith.constant 0 : index
    %48 = vector.load %arg5[%c7, %c0_15] : memref<8x64xf32, #tpu.memory_space<vmem>>, vector<1x64xf32>
    tpu.vector_store %arg5[%c7, %c0_15], %47 {strides = array<i32>} : memref<8x64xf32, #tpu.memory_space<vmem>>, vector<1x64xf32>,
    %c0_16 = arith.constant 0 : index
    %c0_17 = arith.constant 0 : index
    %49 = vector.load %arg5[%c0_16, %c0_17] : memref<8x64xf32, #tpu.memory_space<vmem>>, vector<8x64xf32>
    %c0_18 = arith.constant 0 : index
    %c0_19 = arith.constant 0 : index
    %50 = vector.load %arg3[%c0_18, %c0_19] : memref<64x128xf32, #tpu.memory_space<vmem>>, vector<64x128xf32>
    %cst = arith.constant dense<0.000000e+00> : vector<8x128xf32>
    %51 = tpu.matmul %49, %50, %cst {dimension_numbers = #tpu.dot_dimension_numbers<[1], [0], [0], [1], [0, 0, 1, 1], [], []>} : vector<8x64xf32>, vector<64x128xf32>, vector<8x128xf32> -> vector<8x128xf32>
    %c0_20 = arith.constant 0 : index
    %c0_21 = arith.constant 0 : index
    %52 = vector.load %arg4[%c0_20, %c0_21] : memref<8x128xf32, #tpu.memory_space<vmem>>, vector<8x128xf32>
    tpu.vector_store %arg4[%c0_20, %c0_21], %51 {strides = array<i32>} : memref<8x128xf32, #tpu.memory_space<vmem>>, vector<8x128xf32>,
    return
  }
  func.func @transform_0(%arg0: i32, %arg1: memref<8xi32, #tpu.memory_space<smem>>) -> (i32, i32) {
    %c0_i32 = arith.constant 0 : i32
    %c0_i32_0 = arith.constant 0 : i32
    %c0_i32_1 = arith.constant 0 : i32
    return %c0_i32, %c0_i32_0 : i32, i32
  }
  func.func @transform_1(%arg0: i32, %arg1: memref<8xi32, #tpu.memory_space<smem>>) -> (i32, i32) {
    %c0_i32 = arith.constant 0 : i32
    %c0_i32_0 = arith.constant 0 : i32
    %c0_i32_1 = arith.constant 0 : i32
    return %c0_i32, %c0_i32_0 : i32, i32
  }
  func.func @transform_2(%arg0: i32, %arg1: memref<8xi32, #tpu.memory_space<smem>>) -> (i32, i32) {
    %c0_i32 = arith.constant 0 : i32
    %c0_i32_0 = arith.constant 0 : i32
    return %arg0, %c0_i32 : i32, i32
  }
}

</mosaic_0001>

<llo_original>
// kernel: forward.1
$region0: #{forward.1}
  #allocation0 [shape = 'u32[]', space=smem, size = 0x4, offset = 0x4, fixed_abs, tag = 'smem constant byte address 0x4 - core index']
  #allocation1 [shape = 'u32[72,128]{1,0:T(1,128)}', space=vmem, size = 0x9000, scoped, tag = 'internal scratch']
  #allocation2 [shape = 'f32[8,64]{1,0:T(8,128)}', space=vmem, size = 0x1000, scoped, tag = 'scratch operand']
  #allocation3 [shape = 's32[1]{0}', space=sflag, size = 0x4, scoped, tag = 'scoped memory for forward.1']
  #allocation4 [shape = 'u8[512]{0}', space=smem, size = 0x200, scoped, tag = 'prefetched SMEM operand 0']
  %s0 = inlined_call_operand.vmem [shape: s32[8], index: 0, kind: input, shape index: {}]
  %s1 = inlined_call_operand.vmem [shape: f32[64,64], index: 1, kind: input, shape index: {}]
  %s2 = inlined_call_operand.vmem [shape: f32[64,128], index: 2, kind: input, shape index: {}]
  %s3 = inlined_call_operand.hbm [shape: f32[8,128], index: 3, kind: output, shape index: {}]
  %s4 = sld [smem:[#allocation0]]
  $region18: #{forward.1} parent=0
    _
  %s6 = ssub.s32 1, %s4
  %s7 = scalar_select 0, %s6, %s4
  %s9 = sshll.u32 %s0, 4
  %s10 = int_to_ptr.vmem [resolvable:$true] %s9
  %12 = dma.vmem_to_smem %s10, 16, [#allocation4], [#allocation3]
  %14 = dma.done [#allocation3], 16
  %15 = sfence
  $region1: #{forward.1} parent=0
    #allocation5 [shape = 'u8[4096]{0}', space=vmem, size = 0x1000, scoped, tag = 'output window, operand 0, single buffered']
    #allocation6 [shape = 's32[1]{0}', space=sflag, size = 0x4, scoped, tag = 'scoped memory for forward.1']
    %16 = vsyncpa [#allocation6], 0
    // Predicated region
    $region2: #{forward.1} parent=1 // pred_check
      _
    $region3: #{forward.1} parent=1 // pred_check_branch
      %18 = sbr.rel (0) target = $region5
    $region4: #{forward.1} parent=1 // pred_region
      _
    $region5: #{forward.1} parent=1 // pred_fallthru
      _
    // Predicated region
    $region6: #{forward.1} parent=1 // pred_check
      _
    $region7: #{forward.1} parent=1 // pred_check_branch
      %20 = sbr.rel (0) target = $region9
    $region8: #{forward.1} parent=1 // pred_region
      _
    $region9: #{forward.1} parent=1 // pred_fallthru
      _
    %s21 = smul.u32 0, 8
    %s22 = sld [smem:[#allocation4 + %s21]]
    %s23 = scalar_lea.vmem %s1, %s22
    %v24 = vld [vmem:[%s23] sm:$0x1]
    %vm25 = vcmask 516096
    %26 = vst.msk [vmem:[#allocation2] sm:$0x1] %vm25, %v24
    %s27 = sadd.s32 %s21, 1
    %s28 = sld [smem:[#allocation4 + %s27]]
    %s29 = scalar_lea.vmem %s1, %s28
    %v30 = vld [vmem:[%s29] sm:$0x1]
    %31 = vst.msk [vmem:[#allocation2 + $0x1] sm:$0x1] %vm25, %v30
    %s32 = sadd.s32 %s21, 2
    %s33 = sld [smem:[#allocation4 + %s32]]
    %s34 = scalar_lea.vmem %s1, %s33
    %v35 = vld [vmem:[%s34] sm:$0x1]
    %36 = vst.msk [vmem:[#allocation2 + $0x2] sm:$0x1] %vm25, %v35
    %s37 = sadd.s32 %s21, 3
    %s38 = sld [smem:[#allocation4 + %s37]]
    %s39 = scalar_lea.vmem %s1, %s38
    %v40 = vld [vmem:[%s39] sm:$0x1]
    %41 = vst.msk [vmem:[#allocation2 + $0x3] sm:$0x1] %vm25, %v40
    %s42 = sadd.s32 %s21, 4
    %s43 = sld [smem:[#allocation4 + %s42]]
    %s44 = scalar_lea.vmem %s1, %s43
    %v45 = vld [vmem:[%s44] sm:$0x1]
    %46 = vst.msk [vmem:[#allocation2 + $0x4] sm:$0x1] %vm25, %v45
    %s47 = sadd.s32 %s21, 5
    %s48 = sld [smem:[#allocation4 + %s47]]
    %s49 = scalar_lea.vmem %s1, %s48
    %v50 = vld [vmem:[%s49] sm:$0x1]
    %51 = vst.msk [vmem:[#allocation2 + $0x5] sm:$0x1] %vm25, %v50
    %s52 = sadd.s32 %s21, 6
    %s53 = sld [smem:[#allocation4 + %s52]]
    %s54 = scalar_lea.vmem %s1, %s53
    %v55 = vld [vmem:[%s54] sm:$0x1]
    %56 = vst.msk [vmem:[#allocation2 + $0x6] sm:$0x1] %vm25, %v55
    %s57 = sadd.s32 %s21, 7
    %s58 = sld [smem:[#allocation4 + %s57]]
    %s59 = scalar_lea.vmem %s1, %s58
    %v60 = vld [vmem:[%s59] sm:$0x1]
    %61 = vst.msk [vmem:[#allocation2 + $0x7] sm:$0x1] %vm25, %v60
    %v62 = vld [vmem:[#allocation2] sm:$0xff]
    %v63 = vld [vmem:[%s2] sm:$0xff]
    %v64 = vld [vmem:[%s2 + $0x8] sm:$0xff]
    %v65 = vld [vmem:[%s2 + $0x10] sm:$0xff]
    %v66 = vld [vmem:[%s2 + $0x18] sm:$0xff]
    %v67 = vld [vmem:[%s2 + $0x20] sm:$0xff]
    %v68 = vld [vmem:[%s2 + $0x28] sm:$0xff]
    %v69 = vld [vmem:[%s2 + $0x30] sm:$0xff]
    %v70 = vld [vmem:[%s2 + $0x38] sm:$0xff]
    %vm71 = vcmask 523264
    %v73 = vsel %vm71, %v62, 0
    %75 = vmatpush.msra.mxu0 0.0
    %76 = vmatpush.msra.mxu0 0.0
    %77 = vmatpush.msra.mxu0 0.0
    %78 = vmatpush.msra.mxu0 0.0
    %79 = vmatpush.msra.mxu0 0.0
    %80 = vmatpush.msra.mxu0 0.0
    %81 = vmatpush.msra.mxu0 0.0
    %82 = vmatpush.msra.mxu0 0.0
    %83 = vmatpush.msra.mxu0 %v70
    %84 = vmatpush.msra.mxu0 %v69
    %85 = vmatpush.msra.mxu0 %v68
    %86 = vmatpush.msra.mxu0 %v67
    %87 = vmatpush.msra.mxu0 %v66
    %88 = vmatpush.msra.mxu0 %v65
    %89 = vmatpush.msra.mxu0 %v64
    %90 = vmatpush.msra.mxu0 %v63
    %91 = vmatmul.f32.gmra.mxu0 %v73
    %v92 = vpop.f32.mrf.mxu0
    %v93 = vadd.f32 0.0, %v92
    %94 = vdwg.mxu0
    %95 = vst [vmem:[#allocation5] sm:$0xff] %v93
    // Predicated region
    $region10: #{forward.1} parent=1 // pred_check
      _
    $region11: #{forward.1} parent=1 // pred_check_branch
      %97 = sbr.rel (0) target = $region13
    $region12: #{forward.1} parent=1 // pred_region
      %99 = vsyncadd [#allocation6], 0
      %s101 = sshll.u32 [#allocation5], 4
      %s102 = int_to_ptr.vmem [resolvable:$true] %s101
      %s103 = sshll.u32 %s3, 4
      %s104 = int_to_ptr.hbm [resolvable:$true] %s103
      %106 = dma.vmem_to_hbm [thread:$0]  %s102, 128, %s104, [#allocation6]
    $region13: #{forward.1} parent=1 // pred_fallthru
      _
    // Predicated region
    $region14: #{forward.1} parent=1 // pred_check
      _
    $region15: #{forward.1} parent=1 // pred_check_branch
      %108 = sbr.rel (0) target = $region17
    $region16: #{forward.1} parent=1 // pred_region
      %110 = dma.done [#allocation6], 128
    $region17: #{forward.1} parent=1 // pred_fallthru
      _
    %111 = vsyncpa [#allocation6], 1

</llo_original>
